<compile_context>
chip_gen: v7x
topology: tpu7x:2x2x1
jax: 0.10.0
libtpu: 0.0.40
codegen_flags: <defaults>
</compile_context>

<pallas_src>
import functools

import jax
import jax.numpy as jnp
import numpy as np
from jax import lax
from jax.experimental import pallas as pl
from jax.experimental.pallas import tpu as pltpu


def _round_up(x, m):
    return ((x + m - 1) // m) * m


def enc_kernel(x_ref, w1_ref, b1_ref, w2_ref, b2_ref, w3_ref, b3_ref, out_ref,
               *, compute_dtype):
    """Fused 3-layer MLP.

    x_ref is (block_b, in_size) -- the input's natural layout.  Every matmul
    produces (features, block_b), so the batch stays on the lane axis and the
    output store is lane-dense.
    """
    x = x_ref[...].astype(compute_dtype)          # cast in-VMEM, not via HBM

    # Layer 1: contract the feature axis of both operands:
    #   (h1, in) . (block_b, in) -> (h1, block_b)
    # The implied transpose of the x tile is XLU work (slack), not HBM traffic.
    h1 = lax.dot_general(w1_ref[...], x, (((1,), (1,)), ((), ())),
                         preferred_element_type=jnp.float32)
    h1 = jnp.maximum(h1 + b1_ref[...], 0.0)       # bias + ReLU on the f32 acc

    # Layer 2: (h2, h1) @ (h1, block_b) -> (h2, block_b)
    h2 = jnp.dot(w2_ref[...], h1.astype(compute_dtype),
                 preferred_element_type=jnp.float32)
    h2 = jnp.maximum(h2 + b2_ref[...], 0.0)

    # Layer 3: (latent, h2) @ (h2, block_b) -> (latent, block_b)
    z = jnp.dot(w3_ref[...], h2.astype(compute_dtype),
                preferred_element_type=jnp.float32)
    z = jnp.maximum(z + b3_ref[...], 0.0)

    out_ref[...] = z.astype(out_ref.dtype)


def _pick_block_b(B):
    if B <= 1024:
        return B  # single lane-dense step; problem is tiny
    # >= 2 grid steps (keeps both v7x TensorCores busy under "parallel") and
    # tiles up to 8192 lanes, amortizing the ~0.35 us per-step overhead while
    # staying far inside every generation's scoped VMEM.
    return min(8192, _round_up(pl.cdiv(B, 2), 512))


def enc_forward(w, params, *, block_b=None, compute_dtype=jnp.bfloat16,
                out_dtype=None, feature_major_output=False):
    """Run the fused encoder Pallas kernel.

    w:      (B, in_size), consumed in its natural layout (no wrapper transpose).
    params: PyTorch-layout weights/biases:
            W1 (h1, in_size), b1 (h1, 1), W2 (h2, h1), b2 (h2, 1),
            W3 (latent, h2),  b3 (latent, 1)
    Returns (B, latent) by default; (latent, B) when feature_major_output=True
    (lets a fused, feature-major consumer skip the final XLA transpose).

    compute_dtype: streaming dtype for x/W on the MXU (f32 accumulate always).
        On v7x, jnp.float8_e4m3fn would halve x's HBM traffic further (fp8 MXU
        is v7x-only and needs per-tensor scaling); not enabled by default.
    """
    B, in_size = w.shape
    W1, b1 = params["W1"], params["b1"]
    W2, b2 = params["W2"], params["b2"]
    W3, b3 = params["W3"], params["b3"]
    h1, h2, latent = W1.shape[0], W2.shape[0], W3.shape[0]
    out_dtype = w.dtype if out_dtype is None else out_dtype

    if block_b is None:
        block_b = _pick_block_b(B)

    # Weights stream in compute_dtype (tiny one-off casts, fused/hoisted under
    # jit); biases are added on the f32 accumulator so they stay f32.
    W1c, W2c, W3c = (Wi.astype(compute_dtype) for Wi in (W1, W2, W3))
    b1f, b2f, b3f = (bi.astype(jnp.float32) for bi in (b1, b2, b3))

    grid = (pl.cdiv(B, block_b),)
    rep = lambda i: (0, 0)  # weights/biases: same block every grid step
    # NOTE: replicated operands stay default double-buffered; at ~10 KiB total
    # that is negligible and Pallas already skips re-DMA for unchanged block
    # indices, so single-buffering them was deliberately left out.

    nbytes = lambda a: int(a.size) * a.dtype.itemsize
    cost = pl.CostEstimate(
        flops=2 * B * (in_size * h1 + h1 * h2 + h2 * latent),
        transcendentals=0,
        bytes_accessed=(nbytes(w) + nbytes(W1c) + nbytes(W2c) + nbytes(W3c)
                        + nbytes(b1f) + nbytes(b2f) + nbytes(b3f)
                        + B * latent * jnp.dtype(out_dtype).itemsize),
    )

    z_t = pl.pallas_call(
        functools.partial(enc_kernel, compute_dtype=compute_dtype),
        out_shape=jax.ShapeDtypeStruct((latent, B), out_dtype),
        grid_spec=pltpu.PrefetchScalarGridSpec(
            num_scalar_prefetch=0,
            grid=grid,
            in_specs=[
                pl.BlockSpec((block_b, in_size), lambda i: (i, 0)),
                pl.BlockSpec((h1, in_size), rep),
                pl.BlockSpec((h1, 1), rep),
                pl.BlockSpec((h2, h1), rep),
                pl.BlockSpec((h2, 1), rep),
                pl.BlockSpec((latent, h2), rep),
                pl.BlockSpec((latent, 1), rep),
            ],
            out_specs=pl.BlockSpec((latent, block_b), lambda i: (0, i)),
        ),
        compiler_params=pltpu.CompilerParams(
            dimension_semantics=("parallel",),
        ),
        cost_estimate=cost,
    )(w, W1c, b1f, W2c, b2f, W3c, b3f)

    if feature_major_output:
        return z_t          # (latent, B): no extra XLA transpose pass
    return z_t.T            # PyTorch layout (B, latent)


def init_params(key, in_size, latent_size):
    """Deterministic init mirroring nn.Linear's U(-1/sqrt(fan_in), 1/sqrt(fan_in)).

    Weights are kept in PyTorch's (out_features, in_features) layout; biases as
    (out_features, 1) so they broadcast over the lane (batch) axis in-kernel.
    """
    h1 = in_size // 2
    h2 = in_size // 4
    ks = jax.random.split(key, 6)

    def linear(kw, kb, fan_in, fan_out):
        bound = 1.0 / np.sqrt(fan_in)
        W = jax.random.uniform(kw, (fan_out, fan_in), jnp.float32, -bound, bound)
        b = jax.random.uniform(kb, (fan_out, 1), jnp.float32, -bound, bound)
        return W, b

    W1, b1 = linear(ks[0], ks[1], in_size, h1)
    W2, b2 = linear(ks[2], ks[3], h1, h2)
    W3, b3 = linear(ks[4], ks[5], h2, latent_size)
    return {"W1": W1, "b1": b1, "W2": W2, "b2": b2, "W3": W3, "b3": b3}


def enc_reference(w, p):
    h = jnp.maximum(w @ p["W1"].T + p["b1"][:, 0], 0.0)
    h = jnp.maximum(h @ p["W2"].T + p["b2"][:, 0], 0.0)
    return jnp.maximum(h @ p["W3"].T + p["b3"][:, 0], 0.0)


if __name__ == "__main__":
    # Shapes consistent with the module: in_size=64 -> h1=32, h2=16, latent=8.
    in_size, latent_size = 64, 8
    key = jax.random.PRNGKey(0)
    k_in, k_param, k_mid, k_big = jax.random.split(key, 4)
    params = init_params(k_param, in_size, latent_size)

    # 1) Small batch, exact f32 path -> tight tolerance.
    w = jax.random.normal(k_in, (8, in_size), jnp.float32)
    z_ref = enc_reference(w, params)
    z_f32 = jax.block_until_ready(enc_forward(w, params, compute_dtype=jnp.float32))
    np.testing.assert_allclose(np.asarray(z_f32), np.asarray(z_ref),
                               rtol=1e-5, atol=1e-5)

    # 2) Default mixed precision (bf16 streaming, f32 accumulate) -> loose tol.
    z_bf16 = jax.block_until_ready(enc_forward(w, params))
    np.testing.assert_allclose(np.asarray(z_bf16), np.asarray(z_ref),
                               rtol=2e-2, atol=2e-2)

    # 3) Multi-step grid with a partial last block (B=320, block_b=128 -> 3
    #    steps), plus the transpose-free feature-major output path.
    w_mid = jax.random.normal(k_mid, (320, in_size), jnp.float32)
    z_mid_ref = enc_reference(w_mid, params)
    z_mid = jax.block_until_ready(enc_forward(w_mid, params, block_b=128))
    np.testing.assert_allclose(np.asarray(z_mid), np.asarray(z_mid_ref),
                               rtol=2e-2, atol=2e-2)
    z_fm = jax.block_until_ready(
        enc_forward(w_mid, params, block_b=128, feature_major_output=True))
    np.testing.assert_allclose(np.asarray(z_fm).T, np.asarray(z_mid_ref),
                               rtol=2e-2, atol=2e-2)

    # 4) Automatic block selection: B=2048 -> block_b=1024, grid=2 so both
    #    v7x TensorCores get a step under dimension_semantics=("parallel",).
    w_big = jax.random.normal(k_big, (2048, in_size), jnp.float32)
    z_big_ref = enc_reference(w_big, params)
    z_big = jax.block_until_ready(enc_forward(w_big, params))
    np.testing.assert_allclose(np.asarray(z_big), np.asarray(z_big_ref),
                               rtol=2e-2, atol=2e-2)

    print("KERNEL_OK")
</pallas_src>

<mosaic_0001>
module attributes {stable_mosaic.version = 11 : i64} {
  func.func @enc_kernel(%arg0: i32, %arg1: memref<8x64xf32, #tpu.memory_space<vmem>>, %arg2: memref<32x64xf32, #tpu.memory_space<vmem>>, %arg3: memref<32x1xf32, #tpu.memory_space<vmem>>, %arg4: memref<16x32xf32, #tpu.memory_space<vmem>>, %arg5: memref<16x1xf32, #tpu.memory_space<vmem>>, %arg6: memref<8x16xf32, #tpu.memory_space<vmem>>, %arg7: memref<8x1xf32, #tpu.memory_space<vmem>>, %arg8: memref<8x8xf32, #tpu.memory_space<vmem>>) attributes {dimension_semantics = [#tpu.dimension_semantics<parallel>], iteration_bounds = array<i64: 1>, scalar_prefetch = 0 : i64, scratch_operands = 0 : i64, tpu.core_type = #tpu.core_type<tc>, window_params = [{transform_indices = @transform_0, window_bounds = array<i64: 8, 64>}, {pipeline_mode = #tpu.pipeline_mode<synchronous>, transform_indices = @transform_1, window_bounds = array<i64: 32, 64>}, {pipeline_mode = #tpu.pipeline_mode<synchronous>, transform_indices = @transform_2, window_bounds = array<i64: 32, 1>}, {pipeline_mode = #tpu.pipeline_mode<synchronous>, transform_indices = @transform_3, window_bounds = array<i64: 16, 32>}, {pipeline_mode = #tpu.pipeline_mode<synchronous>, transform_indices = @transform_4, window_bounds = array<i64: 16, 1>}, {pipeline_mode = #tpu.pipeline_mode<synchronous>, transform_indices = @transform_5, window_bounds = array<i64: 8, 16>}, {pipeline_mode = #tpu.pipeline_mode<synchronous>, transform_indices = @transform_6, window_bounds = array<i64: 8, 1>}, {transform_indices = @transform_7, window_bounds = array<i64: 8, 8>}]} {
    %c0 = arith.constant 0 : index
    %c0_0 = arith.constant 0 : index
    %0 = vector.load %arg1[%c0, %c0_0] : memref<8x64xf32, #tpu.memory_space<vmem>>, vector<8x64xf32>
    %c0_1 = arith.constant 0 : index
    %c0_2 = arith.constant 0 : index
    %1 = vector.load %arg2[%c0_1, %c0_2] : memref<32x64xf32, #tpu.memory_space<vmem>>, vector<32x64xf32>
    %cst = arith.constant dense<0.000000e+00> : vector<32x8xf32>
    %2 = tpu.matmul %1, %0, %cst {dimension_numbers = #tpu.dot_dimension_numbers<[1], [1], [0], [0], [0, 0, 1, 0], [], []>} : vector<32x64xf32>, vector<8x64xf32>, vector<32x8xf32> -> vector<32x8xf32>
    %c0_3 = arith.constant 0 : index
    %c0_4 = arith.constant 0 : index
    %3 = vector.load %arg3[%c0_3, %c0_4] : memref<32x1xf32, #tpu.memory_space<vmem>>, vector<32x1xf32>
    %4 = vector.broadcast %3 : vector<32x1xf32> to vector<32x8xf32>
    %5 = arith.addf %2, %4 : vector<32x8xf32>
    %cst_5 = arith.constant 0.000000e+00 : f32
    %6 = vector.broadcast %cst_5 : f32 to vector<32x8xf32>
    %7 = arith.maximumf %5, %6 : vector<32x8xf32>
    %c0_6 = arith.constant 0 : index
    %c0_7 = arith.constant 0 : index
    %8 = vector.load %arg4[%c0_6, %c0_7] : memref<16x32xf32, #tpu.memory_space<vmem>>, vector<16x32xf32>
    %cst_8 = arith.constant dense<0.000000e+00> : vector<16x8xf32>
    %9 = tpu.matmul %8, %7, %cst_8 {dimension_numbers = #tpu.dot_dimension_numbers<[1], [0], [0], [1], [0, 0, 1, 1], [], []>} : vector<16x32xf32>, vector<32x8xf32>, vector<16x8xf32> -> vector<16x8xf32>
    %c0_9 = arith.constant 0 : index
    %c0_10 = arith.constant 0 : index
    %10 = vector.load %arg5[%c0_9, %c0_10] : memref<16x1xf32, #tpu.memory_space<vmem>>, vector<16x1xf32>
    %11 = vector.broadcast %10 : vector<16x1xf32> to vector<16x8xf32>
    %12 = arith.addf %9, %11 : vector<16x8xf32>
    %cst_11 = arith.constant 0.000000e+00 : f32
    %13 = vector.broadcast %cst_11 : f32 to vector<16x8xf32>
    %14 = arith.maximumf %12, %13 : vector<16x8xf32>
    %c0_12 = arith.constant 0 : index
    %c0_13 = arith.constant 0 : index
    %15 = vector.load %arg6[%c0_12, %c0_13] : memref<8x16xf32, #tpu.memory_space<vmem>>, vector<8x16xf32>
    %cst_14 = arith.constant dense<0.000000e+00> : vector<8x8xf32>
    %16 = tpu.matmul %15, %14, %cst_14 {dimension_numbers = #tpu.dot_dimension_numbers<[1], [0], [0], [1], [0, 0, 1, 1], [], []>} : vector<8x16xf32>, vector<16x8xf32>, vector<8x8xf32> -> vector<8x8xf32>
    %c0_15 = arith.constant 0 : index
    %c0_16 = arith.constant 0 : index
    %17 = vector.load %arg7[%c0_15, %c0_16] : memref<8x1xf32, #tpu.memory_space<vmem>>, vector<8x1xf32>
    %18 = vector.broadcast %17 : vector<8x1xf32> to vector<8x8xf32>
    %19 = arith.addf %16, %18 : vector<8x8xf32>
    %cst_17 = arith.constant 0.000000e+00 : f32
    %20 = vector.broadcast %cst_17 : f32 to vector<8x8xf32>
    %21 = arith.maximumf %19, %20 : vector<8x8xf32>
    %c0_18 = arith.constant 0 : index
    %c0_19 = arith.constant 0 : index
    %22 = vector.load %arg8[%c0_18, %c0_19] : memref<8x8xf32, #tpu.memory_space<vmem>>, vector<8x8xf32>
    tpu.vector_store %arg8[%c0_18, %c0_19], %21 {strides = array<i32>} : memref<8x8xf32, #tpu.memory_space<vmem>>, vector<8x8xf32>,
    return
  }
  func.func @transform_0(%arg0: i32) -> (i32, i32) {
    %c0_i32 = arith.constant 0 : i32
    %c0_i32_0 = arith.constant 0 : i32
    return %arg0, %c0_i32 : i32, i32
  }
  func.func @transform_1(%arg0: i32) -> (i32, i32) {
    %c0_i32 = arith.constant 0 : i32
    %c0_i32_0 = arith.constant 0 : i32
    %c0_i32_1 = arith.constant 0 : i32
    return %c0_i32, %c0_i32_0 : i32, i32
  }
  func.func @transform_2(%arg0: i32) -> (i32, i32) {
    %c0_i32 = arith.constant 0 : i32
    %c0_i32_0 = arith.constant 0 : i32
    %c0_i32_1 = arith.constant 0 : i32
    return %c0_i32, %c0_i32_0 : i32, i32
  }
  func.func @transform_3(%arg0: i32) -> (i32, i32) {
    %c0_i32 = arith.constant 0 : i32
    %c0_i32_0 = arith.constant 0 : i32
    %c0_i32_1 = arith.constant 0 : i32
    return %c0_i32, %c0_i32_0 : i32, i32
  }
  func.func @transform_4(%arg0: i32) -> (i32, i32) {
    %c0_i32 = arith.constant 0 : i32
    %c0_i32_0 = arith.constant 0 : i32
    %c0_i32_1 = arith.constant 0 : i32
    return %c0_i32, %c0_i32_0 : i32, i32
  }
  func.func @transform_5(%arg0: i32) -> (i32, i32) {
    %c0_i32 = arith.constant 0 : i32
    %c0_i32_0 = arith.constant 0 : i32
    %c0_i32_1 = arith.constant 0 : i32
    return %c0_i32, %c0_i32_0 : i32, i32
  }
  func.func @transform_6(%arg0: i32) -> (i32, i32) {
    %c0_i32 = arith.constant 0 : i32
    %c0_i32_0 = arith.constant 0 : i32
    %c0_i32_1 = arith.constant 0 : i32
    return %c0_i32, %c0_i32_0 : i32, i32
  }
  func.func @transform_7(%arg0: i32) -> (i32, i32) {
    %c0_i32 = arith.constant 0 : i32
    %c0_i32_0 = arith.constant 0 : i32
    return %c0_i32, %arg0 : i32, i32
  }
}

</mosaic_0001>

<llo_original>
// kernel: tpu_custom_call.1
$region0: #{tpu_custom_call.1}
  #allocation0 [shape = 'u32[]', space=smem, size = 0x4, offset = 0x4, fixed_abs, tag = 'smem constant byte address 0x4 - core index']
  #allocation1 [shape = 'u32[144,128]{1,0:T(1,128)}', space=vmem, size = 0x12000, scoped, tag = 'internal scratch']
  %s0 = inlined_call_operand.vmem [shape: f32[8,64], index: 0, kind: input, shape index: {}]
  %s1 = inlined_call_operand.vmem [shape: f32[32,64], index: 1, kind: input, shape index: {}]
  %s2 = inlined_call_operand.vmem [shape: f32[32,1], index: 2, kind: input, shape index: {}]
  %s3 = inlined_call_operand.vmem [shape: f32[16,32], index: 3, kind: input, shape index: {}]
  %s4 = inlined_call_operand.vmem [shape: f32[16,1], index: 4, kind: input, shape index: {}]
  %s5 = inlined_call_operand.vmem [shape: f32[8,16], index: 5, kind: input, shape index: {}]
  %s6 = inlined_call_operand.vmem [shape: f32[8,1], index: 6, kind: input, shape index: {}]
  %s7 = inlined_call_operand.hbm [shape: f32[8,8], index: 7, kind: output, shape index: {}]
  %s8 = sld [smem:[#allocation0]]
  $region38: #{tpu_custom_call.1} parent=0
    _
  %s10 = ssub.s32 1, %s8
  %s11 = scalar_select 0, %s10, %s8
  $region1: #{tpu_custom_call.1} parent=0
    #allocation2 [shape = 'u8[4096]{0}', space=vmem, size = 0x1000, scoped, tag = 'output window, operand 0, single buffered']
    #allocation3 [shape = 's32[1]{0}', space=sflag, size = 0x4, scoped, tag = 'scoped memory for tpu_custom_call.1']
    %12 = vsyncpa [#allocation3], 0
    // Predicated region
    $region2: #{tpu_custom_call.1} parent=1 // pred_check
      _
    $region3: #{tpu_custom_call.1} parent=1 // pred_check_branch
      %14 = sbr.rel (0) target = $region5
    $region4: #{tpu_custom_call.1} parent=1 // pred_region
      _
    $region5: #{tpu_custom_call.1} parent=1 // pred_fallthru
      _
    // Predicated region
    $region6: #{tpu_custom_call.1} parent=1 // pred_check
      _
    $region7: #{tpu_custom_call.1} parent=1 // pred_check_branch
      %16 = sbr.rel (0) target = $region9
    $region8: #{tpu_custom_call.1} parent=1 // pred_region
      _
    $region9: #{tpu_custom_call.1} parent=1 // pred_fallthru
      _
    // Predicated region
    $region10: #{tpu_custom_call.1} parent=1 // pred_check
      _
    $region11: #{tpu_custom_call.1} parent=1 // pred_check_branch
      %18 = sbr.rel (0) target = $region13
    $region12: #{tpu_custom_call.1} parent=1 // pred_region
      _
    $region13: #{tpu_custom_call.1} parent=1 // pred_fallthru
      _
    // Predicated region
    $region14: #{tpu_custom_call.1} parent=1 // pred_check
      _
    $region15: #{tpu_custom_call.1} parent=1 // pred_check_branch
      %20 = sbr.rel (0) target = $region17
    $region16: #{tpu_custom_call.1} parent=1 // pred_region
      _
    $region17: #{tpu_custom_call.1} parent=1 // pred_fallthru
      _
    // Predicated region
    $region18: #{tpu_custom_call.1} parent=1 // pred_check
      _
    $region19: #{tpu_custom_call.1} parent=1 // pred_check_branch
      %22 = sbr.rel (0) target = $region21
    $region20: #{tpu_custom_call.1} parent=1 // pred_region
      _
    $region21: #{tpu_custom_call.1} parent=1 // pred_fallthru
      _
    // Predicated region
    $region22: #{tpu_custom_call.1} parent=1 // pred_check
      _
    $region23: #{tpu_custom_call.1} parent=1 // pred_check_branch
      %24 = sbr.rel (0) target = $region25
    $region24: #{tpu_custom_call.1} parent=1 // pred_region
      _
    $region25: #{tpu_custom_call.1} parent=1 // pred_fallthru
      _
    // Predicated region
    $region26: #{tpu_custom_call.1} parent=1 // pred_check
      _
    $region27: #{tpu_custom_call.1} parent=1 // pred_check_branch
      %26 = sbr.rel (0) target = $region29
    $region28: #{tpu_custom_call.1} parent=1 // pred_region
      _
    $region29: #{tpu_custom_call.1} parent=1 // pred_fallthru
      _
    %v27 = vld [vmem:[%s0] sm:$0xff]
    %v28 = vld [vmem:[%s1] sm:$0xff]
    %v29 = vld [vmem:[%s1 + $0x8] sm:$0xff]
    %v30 = vld [vmem:[%s1 + $0x10] sm:$0xff]
    %v31 = vld [vmem:[%s1 + $0x18] sm:$0xff]
    %v32 = vld [vmem:[%s2] sm:$0xff]
    %v33 = vld [vmem:[%s2 + $0x8] sm:$0xff]
    %v34 = vld [vmem:[%s2 + $0x10] sm:$0xff]
    %v35 = vld [vmem:[%s2 + $0x18] sm:$0xff]
    %37 = vset.pattern.permute.xlu0 0
    %38 = vperm.xlu0 %37, %v32
    %v39 = vpop.permute.xlu0 %38
    %42 = vset.pattern.permute.xlu0 0
    %43 = vperm.xlu0 %42, %v33
    %v44 = vpop.permute.xlu0 %43
    %47 = vset.pattern.permute.xlu0 0
    %48 = vperm.xlu0 %47, %v34
    %v49 = vpop.permute.xlu0 %48
    %52 = vset.pattern.permute.xlu0 0
    %53 = vperm.xlu0 %52, %v35
    %v54 = vpop.permute.xlu0 %53
    %vm56 = vcmask 523264
    %v58 = vsel %vm56, %v28, 0
    %v61 = vsel %vm56, %v29, 0
    %v64 = vsel %vm56, %v30, 0
    %v67 = vsel %vm56, %v31, 0
    %v70 = vsel %vm56, %v27, 0
    %72 = vmatprep.subr.mxu0 0.0
    %73 = vmatpush1.xpose.msra.mxu0 %v70
    %74 = vmatprep.subr.mxu0 0.0
    %75 = vmatpush1.xpose.msra.mxu0 0.0
    %76 = vmatprep.subr.mxu0 0.0
    %77 = vmatpush1.xpose.msra.mxu0 0.0
    %78 = vmatprep.subr.mxu0 0.0
    %79 = vmatpush1.xpose.msra.mxu0 0.0
    %80 = vmatprep.subr.mxu0 0.0
    %81 = vmatpush1.xpose.msra.mxu0 0.0
    %82 = vmatprep.subr.mxu0 0.0
    %83 = vmatpush1.xpose.msra.mxu0 0.0
    %84 = vmatprep.subr.mxu0 0.0
    %85 = vmatpush1.xpose.msra.mxu0 0.0
    %86 = vmatprep.subr.mxu0 0.0
    %87 = vmatpush1.xpose.msra.mxu0 0.0
    %88 = vmatprep.subr.mxu0 0.0
    %89 = vmatpush1.xpose.msra.mxu0 0.0
    %90 = vmatprep.subr.mxu0 0.0
    %91 = vmatpush1.xpose.msra.mxu0 0.0
    %92 = vmatprep.subr.mxu0 0.0
    %93 = vmatpush1.xpose.msra.mxu0 0.0
    %94 = vmatprep.subr.mxu0 0.0
    %95 = vmatpush1.xpose.msra.mxu0 0.0
    %96 = vmatprep.subr.mxu0 0.0
    %97 = vmatpush1.xpose.msra.mxu0 0.0
    %98 = vmatprep.subr.mxu0 0.0
    %99 = vmatpush1.xpose.msra.mxu0 0.0
    %100 = vmatprep.subr.mxu0 0.0
    %101 = vmatpush1.xpose.msra.mxu0 0.0
    %102 = vmatprep.subr.mxu0 0.0
    %103 = vmatpush1.xpose.msra.mxu0 0.0
    %104 = vmatprep.subr.mxu0 0.0
    %105 = vmatpush1.xpose.msra.mxu0 0.0
    %106 = vmatprep.subr.mxu0 0.0
    %107 = vmatpush1.xpose.msra.mxu0 0.0
    %108 = vmatprep.subr.mxu0 0.0
    %109 = vmatpush1.xpose.msra.mxu0 0.0
    %110 = vmatprep.subr.mxu0 0.0
    %111 = vmatpush1.xpose.msra.mxu0 0.0
    %112 = vmatprep.subr.mxu0 0.0
    %113 = vmatpush1.xpose.msra.mxu0 0.0
    %114 = vmatprep.subr.mxu0 0.0
    %115 = vmatpush1.xpose.msra.mxu0 0.0
    %116 = vmatprep.subr.mxu0 0.0
    %117 = vmatpush1.xpose.msra.mxu0 0.0
    %118 = vmatprep.subr.mxu0 0.0
    %119 = vmatpush1.xpose.msra.mxu0 0.0
    %120 = vmatprep.subr.mxu0 0.0
    %121 = vmatpush1.xpose.msra.mxu0 0.0
    %122 = vmatprep.subr.mxu0 0.0
    %123 = vmatpush1.xpose.msra.mxu0 0.0
    %124 = vmatprep.subr.mxu0 0.0
    %125 = vmatpush1.xpose.msra.mxu0 0.0
    %126 = vmatprep.subr.mxu0 0.0
    %127 = vmatpush1.xpose.msra.mxu0 0.0
    %128 = vmatprep.subr.mxu0 0.0
    %129 = vmatpush1.xpose.msra.mxu0 0.0
    %130 = vmatprep.subr.mxu0 0.0
    %131 = vmatpush1.xpose.msra.mxu0 0.0
    %132 = vmatprep.subr.mxu0 0.0
    %133 = vmatpush1.xpose.msra.mxu0 0.0
    %134 = vmatprep.subr.mxu0 0.0
    %135 = vmatpush1.xpose.msra.mxu0 0.0
    %136 = vmatprep.mubr.f32.mxu0 0.0
    %137 = vmatmul.mubr.f32.gmra.mrb[0].mxu0 %v58
    %v138 = vpop.f32.mrb[0].mxu0
    %v139 = vadd.f32 %v39, %v138
    %v140 = vpop.f32.mrb[0].mxu0
    %141 = vmatprep.mubr.f32.mxu0 0.0
    %142 = vmatmul.mubr.f32.gmra.mrb[0].mxu0 %v61
    %v143 = vpop.f32.mrb[0].mxu0
    %v144 = vadd.f32 %v44, %v143
    %v145 = vpop.f32.mrb[0].mxu0
    %146 = vmatprep.mubr.f32.mxu0 0.0
    %147 = vmatmul.mubr.f32.gmra.mrb[0].mxu0 %v64
    %v148 = vpop.f32.mrb[0].mxu0
    %v149 = vadd.f32 %v49, %v148
    %v150 = vpop.f32.mrb[0].mxu0
    %151 = vmatprep.mubr.f32.mxu0 0.0
    %152 = vmatmul.mubr.f32.gmra.mrb[0].mxu0 %v67
    %v153 = vpop.f32.mrb[0].mxu0
    %v154 = vadd.f32 %v54, %v153
    %v155 = vpop.f32.mrb[0].mxu0
    %156 = vdwg.mxu0
    %v157 = vmax.f32 %v139, 0.0
    %v158 = vmax.f32 %v144, 0.0
    %v159 = vmax.f32 %v149, 0.0
    %v160 = vmax.f32 %v154, 0.0
    %v161 = vld [vmem:[%s3] sm:$0xff]
    %v162 = vld [vmem:[%s3 + $0x8] sm:$0xff]
    %v163 = vld [vmem:[%s4] sm:$0xff]
    %v164 = vld [vmem:[%s4 + $0x8] sm:$0xff]
    %166 = vset.pattern.permute.xlu0 0
    %167 = vperm.xlu0 %166, %v163
    %v168 = vpop.permute.xlu0 %167
    %171 = vset.pattern.permute.xlu0 0
    %172 = vperm.xlu0 %171, %v164
    %v173 = vpop.permute.xlu0 %172
    %vm175 = vcmask 261120
    %v177 = vsel %vm175, %v161, 0
    %v180 = vsel %vm175, %v162, 0
    %182 = vmatprep.subr.mxu0 0.0
    %183 = vmatpush1.msra.mxu0 %v157
    %184 = vmatprep.subr.mxu0 0.0
    %185 = vmatpush1.msra.mxu0 %v158
    %186 = vmatprep.subr.mxu0 0.0
    %187 = vmatpush1.msra.mxu0 %v159
    %188 = vmatprep.subr.mxu0 0.0
    %189 = vmatpush1.msra.mxu0 %v160
    %190 = vmatprep.subr.mxu0 0.0
    %191 = vmatpush1.msra.mxu0 0.0
    %192 = vmatprep.subr.mxu0 0.0
    %193 = vmatpush1.msra.mxu0 0.0
    %194 = vmatprep.subr.mxu0 0.0
    %195 = vmatpush1.msra.mxu0 0.0
    %196 = vmatprep.subr.mxu0 0.0
    %197 = vmatpush1.msra.mxu0 0.0
    %198 = vmatprep.subr.mxu0 0.0
    %199 = vmatpush1.msra.mxu0 0.0
    %200 = vmatprep.subr.mxu0 0.0
    %201 = vmatpush1.msra.mxu0 0.0
    %202 = vmatprep.subr.mxu0 0.0
    %203 = vmatpush1.msra.mxu0 0.0
    %204 = vmatprep.subr.mxu0 0.0
    %205 = vmatpush1.msra.mxu0 0.0
    %206 = vmatprep.subr.mxu0 0.0
    %207 = vmatpush1.msra.mxu0 0.0
    %208 = vmatprep.subr.mxu0 0.0
    %209 = vmatpush1.msra.mxu0 0.0
    %210 = vmatprep.subr.mxu0 0.0
    %211 = vmatpush1.msra.mxu0 0.0
    %212 = vmatprep.subr.mxu0 0.0
    %213 = vmatpush1.msra.mxu0 0.0
    %214 = vmatprep.subr.mxu0 0.0
    %215 = vmatpush1.msra.mxu0 0.0
    %216 = vmatprep.subr.mxu0 0.0
    %217 = vmatpush1.msra.mxu0 0.0
    %218 = vmatprep.subr.mxu0 0.0
    %219 = vmatpush1.msra.mxu0 0.0
    %220 = vmatprep.subr.mxu0 0.0
    %221 = vmatpush1.msra.mxu0 0.0
    %222 = vmatprep.subr.mxu0 0.0
    %223 = vmatpush1.msra.mxu0 0.0
    %224 = vmatprep.subr.mxu0 0.0
    %225 = vmatpush1.msra.mxu0 0.0
    %226 = vmatprep.subr.mxu0 0.0
    %227 = vmatpush1.msra.mxu0 0.0
    %228 = vmatprep.subr.mxu0 0.0
    %229 = vmatpush1.msra.mxu0 0.0
    %230 = vmatprep.subr.mxu0 0.0
    %231 = vmatpush1.msra.mxu0 0.0
    %232 = vmatprep.subr.mxu0 0.0
    %233 = vmatpush1.msra.mxu0 0.0
    %234 = vmatprep.subr.mxu0 0.0
    %235 = vmatpush1.msra.mxu0 0.0
    %236 = vmatprep.subr.mxu0 0.0
    %237 = vmatpush1.msra.mxu0 0.0
    %238 = vmatprep.subr.mxu0 0.0
    %239 = vmatpush1.msra.mxu0 0.0
    %240 = vmatprep.subr.mxu0 0.0
    %241 = vmatpush1.msra.mxu0 0.0
    %242 = vmatprep.subr.mxu0 0.0
    %243 = vmatpush1.msra.mxu0 0.0
    %244 = vmatprep.subr.mxu0 0.0
    %245 = vmatpush1.msra.mxu0 0.0
    %246 = vmatprep.mubr.f32.mxu0 0.0
    %247 = vmatmul.mubr.f32.gmra.mrb[0].mxu0 %v177
    %v248 = vpop.f32.mrb[0].mxu0
    %v249 = vadd.f32 %v168, %v248
    %v250 = vpop.f32.mrb[0].mxu0
    %251 = vmatprep.mubr.f32.mxu0 0.0
    %252 = vmatmul.mubr.f32.gmra.mrb[0].mxu0 %v180
    %v253 = vpop.f32.mrb[0].mxu0
    %v254 = vadd.f32 %v173, %v253
    %v255 = vpop.f32.mrb[0].mxu0
    %256 = vdwg.mxu0
    %v257 = vmax.f32 %v249, 0.0
    %v258 = vmax.f32 %v254, 0.0
    %v259 = vld [vmem:[%s5] sm:$0xff]
    %v260 = vld [vmem:[%s6] sm:$0xff]
    %262 = vset.pattern.permute.xlu0 0
    %263 = vperm.xlu0 %262, %v260
    %v264 = vpop.permute.xlu0 %263
    %vm266 = vcmask 130048
    %v268 = vsel %vm266, %v259, 0
    %270 = vmatprep.subr.mxu0 0.0
    %271 = vmatpush1.msra.mxu0 %v257
    %272 = vmatprep.subr.mxu0 0.0
    %273 = vmatpush1.msra.mxu0 %v258
    %274 = vmatprep.subr.mxu0 0.0
    %275 = vmatpush1.msra.mxu0 0.0
    %276 = vmatprep.subr.mxu0 0.0
    %277 = vmatpush1.msra.mxu0 0.0
    %278 = vmatprep.subr.mxu0 0.0
    %279 = vmatpush1.msra.mxu0 0.0
    %280 = vmatprep.subr.mxu0 0.0
    %281 = vmatpush1.msra.mxu0 0.0
    %282 = vmatprep.subr.mxu0 0.0
    %283 = vmatpush1.msra.mxu0 0.0
    %284 = vmatprep.subr.mxu0 0.0
    %285 = vmatpush1.msra.mxu0 0.0
    %286 = vmatprep.subr.mxu0 0.0
    %287 = vmatpush1.msra.mxu0 0.0
    %288 = vmatprep.subr.mxu0 0.0
    %289 = vmatpush1.msra.mxu0 0.0
    %290 = vmatprep.subr.mxu0 0.0
    %291 = vmatpush1.msra.mxu0 0.0
    %292 = vmatprep.subr.mxu0 0.0
    %293 = vmatpush1.msra.mxu0 0.0
    %294 = vmatprep.subr.mxu0 0.0
    %295 = vmatpush1.msra.mxu0 0.0
    %296 = vmatprep.subr.mxu0 0.0
    %297 = vmatpush1.msra.mxu0 0.0
    %298 = vmatprep.subr.mxu0 0.0
    %299 = vmatpush1.msra.mxu0 0.0
    %300 = vmatprep.subr.mxu0 0.0
    %301 = vmatpush1.msra.mxu0 0.0
    %302 = vmatprep.subr.mxu0 0.0
    %303 = vmatpush1.msra.mxu0 0.0
    %304 = vmatprep.subr.mxu0 0.0
    %305 = vmatpush1.msra.mxu0 0.0
    %306 = vmatprep.subr.mxu0 0.0
    %307 = vmatpush1.msra.mxu0 0.0
    %308 = vmatprep.subr.mxu0 0.0
    %309 = vmatpush1.msra.mxu0 0.0
    %310 = vmatprep.subr.mxu0 0.0
    %311 = vmatpush1.msra.mxu0 0.0
    %312 = vmatprep.subr.mxu0 0.0
    %313 = vmatpush1.msra.mxu0 0.0
    %314 = vmatprep.subr.mxu0 0.0
    %315 = vmatpush1.msra.mxu0 0.0
    %316 = vmatprep.subr.mxu0 0.0
    %317 = vmatpush1.msra.mxu0 0.0
    %318 = vmatprep.subr.mxu0 0.0
    %319 = vmatpush1.msra.mxu0 0.0
    %320 = vmatprep.subr.mxu0 0.0
    %321 = vmatpush1.msra.mxu0 0.0
    %322 = vmatprep.subr.mxu0 0.0
    %323 = vmatpush1.msra.mxu0 0.0
    %324 = vmatprep.subr.mxu0 0.0
    %325 = vmatpush1.msra.mxu0 0.0
    %326 = vmatprep.subr.mxu0 0.0
    %327 = vmatpush1.msra.mxu0 0.0
    %328 = vmatprep.subr.mxu0 0.0
    %329 = vmatpush1.msra.mxu0 0.0
    %330 = vmatprep.subr.mxu0 0.0
    %331 = vmatpush1.msra.mxu0 0.0
    %332 = vmatprep.subr.mxu0 0.0
    %333 = vmatpush1.msra.mxu0 0.0
    %334 = vmatprep.mubr.f32.mxu0 0.0
    %335 = vmatmul.mubr.f32.gmra.mrb[0].mxu0 %v268
    %v336 = vpop.f32.mrb[0].mxu0
    %v337 = vadd.f32 %v264, %v336
    %v338 = vpop.f32.mrb[0].mxu0
    %339 = vdwg.mxu0
    %v340 = vmax.f32 %v337, 0.0
    %vm341 = vcmask 64512
    %342 = vst.msk [vmem:[#allocation2] sm:$0xff] %vm341, %v340
    // Predicated region
    $region30: #{tpu_custom_call.1} parent=1 // pred_check
      _
    $region31: #{tpu_custom_call.1} parent=1 // pred_check_branch
      %344 = sbr.rel (0) target = $region33
    $region32: #{tpu_custom_call.1} parent=1 // pred_region
      %s346 = ssub.s32 128, 128
      %347 = vsyncadd [#allocation3], %s346
      %s349 = sshll.u32 [#allocation2], 4
      %s350 = int_to_ptr.vmem [resolvable:$true] %s349
      %352 = dma.vmem_to_hbm [thread:$0]  %s350, 128, %s7, [#allocation3]
    $region33: #{tpu_custom_call.1} parent=1 // pred_fallthru
      _
    // Predicated region
    $region34: #{tpu_custom_call.1} parent=1 // pred_check
      _
    $region35: #{tpu_custom_call.1} parent=1 // pred_check_branch
      %354 = sbr.rel (0) target = $region37
    $region36: #{tpu_custom_call.1} parent=1 // pred_region
      %355 = dma.done [#allocation3], 128
    $region37: #{tpu_custom_call.1} parent=1 // pred_fallthru
      _
    %356 = vsyncpa [#allocation3], 1

</llo_original>
